<compile_context>
chip_gen: v7x
topology: tpu7x:2x2x1
jax: 0.10.0
libtpu: 0.0.40
codegen_flags: <defaults>
</compile_context>

<pallas_src>
import functools
import math

import jax
import jax.numpy as jnp
from jax.experimental import pallas as pl
from jax.experimental.pallas import tpu as pltpu

_HALF_LOG_2PI = 0.5 * math.log(2.0 * math.pi)


def _actor_kernel(obs_ref, w1_ref, w2_ref, wmu_ref, pvec_ref, *rest,
                  mode: str, hidden: int, act_dim: int):
    """mode in {"det", "sample", "eval"}.

    rest = (out_ref,)             for "det"
    rest = (act_in_ref, out_ref)  for "sample" (act_in = eps) / "eval" (act_in = action)

    pvec rows (each lane-0 aligned, padded to a 128-lane multiple):
        row 0: b1   row 1: b2   row 2: b_mu
        row 3: scale ("sample") / 1/scale ("eval") / unused ("det")
    Output layout (narrow -> minimal HBM writeback, single fused store):
        det        : [Bt, A]     = loc                       (action == mode == loc)
        sample/eval: [Bt, 2A+1]  = [action | loc | -0.5*sum(z^2)]
                     (state-independent log-prob constant is added in the wrapper)
    """
    H, A = hidden, act_dim
    if mode == "det":
        (out_ref,) = rest
    else:
        act_in_ref, out_ref = rest

    # Packed parameters: every slice starts at lane 0 (no lane rotations).
    b1 = pvec_ref[0:1, 0:H]                                                 # [1, H]
    b2 = pvec_ref[1:2, 0:H]                                                 # [1, H]
    bmu = pvec_ref[2:3, 0:A]                                                # [1, A]

    # ---- encoder MLP (MXU matmuls, f32 accumulation) ----
    obs = obs_ref[...]                                                      # [Bt, OBS]
    h1 = jnp.tanh(jnp.dot(obs, w1_ref[...],
                          preferred_element_type=jnp.float32) + b1)         # [Bt, H]
    h2 = jnp.tanh(jnp.dot(h1, w2_ref[...],
                          preferred_element_type=jnp.float32) + b2)         # [Bt, H]

    # ---- act_dist head ----
    loc = jnp.dot(h2, wmu_ref[...],
                  preferred_element_type=jnp.float32) + bmu                 # [Bt, A]

    if mode == "det":
        out_ref[...] = loc                       # single store, no padding lanes
        return

    if mode == "sample":
        eps = act_in_ref[...]                                               # [Bt, A]
        scale = pvec_ref[3:4, 0:A]               # exp(log_std), wrapper-precomputed
        action = loc + scale * eps
        z = eps                                  # exactly (action - loc) / scale
    else:  # "eval"
        action = act_in_ref[...]
        inv_scale = pvec_ref[3:4, 0:A]           # exp(-log_std), wrapper-precomputed
        z = (action - loc) * inv_scale

    logp_core = -0.5 * jnp.sum(z * z, axis=-1, keepdims=True)               # [Bt, 1]

    # One fused store: lane placement of the concat rides the (idle) XLU path,
    # the store port sees a single pass over the output tile.
    out_ref[...] = jnp.concatenate([action, loc, logp_core], axis=-1)       # [Bt, 2A+1]


_TILE_CANDIDATES = (2048, 1024, 512, 256, 128)


def _choose_tiling(batch: int):
    """Return (tile_b, padded_batch).

    Large tiles amortize the ~0.35us per-grid-step overhead; batches > 256 always
    get >= 2 grid steps (even count preferred) so the "parallel" batch axis can
    shard across both v7x TensorCores; non-divisible batches are padded up to a
    tile multiple so they still pipeline. Tiles are capped at 2048 rows, well
    inside every generation's default scoped-VMEM limit (incl. v5e's 16 MiB).
    """
    if batch <= 256:
        t = max(8, -(-batch // 8) * 8)           # single tile, 8-row aligned
        return t, t
    best_key, best = None, None
    for t in _TILE_CANDIDATES:
        g = -(-batch // t)
        if g < 2:
            continue
        pad = g * t - batch
        key = (pad, g % 2, -t)                   # least padding, even grid, biggest tile
        if best_key is None or key < best_key:
            best_key, best = key, (t, g * t)
    return best


def actor_forward(params, obs, *, action=None, eps=None, key=None,
                  deterministic=False, eval_action=False):
    """Pallas-backed Actor.forward. Returns (action, log_probs, entropy, loc, scale)."""
    obs = obs.astype(jnp.float32)
    B, OBS = obs.shape
    H = params["w1"].shape[1]
    A = params["w_mu"].shape[1]
    log_std = params["log_std"].astype(jnp.float32)                         # [1, A]
    scale_1a = jnp.exp(log_std)                                             # [1, A]

    if eval_action:
        assert action is not None, "eval_action=True requires `action`"
        mode = "eval"
        act_in = action.astype(jnp.float32)
    elif deterministic:
        mode = "det"
        act_in = None
    else:
        if eps is None:
            if key is None:
                raise ValueError(
                    "stochastic rollout needs `eps` or a PRNG `key` "
                    "(the PyTorch Actor samples internally)")
            eps = jax.random.normal(key, (B, A), jnp.float32)
        mode = "sample"
        act_in = eps.astype(jnp.float32)

    # ---- pack small parameters: one [4, P] slab, each row lane-0 aligned ----
    P = pl.cdiv(max(H, A), 128) * 128

    def _row(v):
        return jnp.pad(v.astype(jnp.float32), ((0, 0), (0, P - v.shape[-1])))

    if mode == "sample":
        row3 = _row(scale_1a)
    elif mode == "eval":
        row3 = _row(jnp.exp(-log_std))
    else:
        row3 = jnp.zeros((1, P), jnp.float32)
    pvec = jnp.concatenate([_row(params["b1"]), _row(params["b2"]),
                            _row(params["b_mu"]), row3], axis=0)            # [4, P]

    # ---- batch tiling (pad B to a tile multiple) ----
    tile_b, b_pad = _choose_tiling(B)
    if b_pad != B:
        obs = jnp.pad(obs, ((0, b_pad - B), (0, 0)))
        if act_in is not None:
            act_in = jnp.pad(act_in, ((0, b_pad - B), (0, 0)))
    grid = (b_pad // tile_b,)

    out_w = A if mode == "det" else 2 * A + 1    # narrow output: no padding lanes

    kernel = functools.partial(_actor_kernel, mode=mode, hidden=H, act_dim=A)

    in_specs = [
        pl.BlockSpec((tile_b, OBS), lambda i: (i, 0)),        # obs (tiled over B)
        pl.BlockSpec((OBS, H), lambda i: (0, 0)),             # w1   (VMEM-resident)
        pl.BlockSpec((H, H), lambda i: (0, 0)),               # w2   (VMEM-resident)
        pl.BlockSpec((H, A), lambda i: (0, 0)),               # w_mu (VMEM-resident)
        pl.BlockSpec((4, P), lambda i: (0, 0)),               # packed biases / scale
    ]
    args = [obs, params["w1"], params["w2"], params["w_mu"], pvec]
    if mode != "det":
        in_specs.append(pl.BlockSpec((tile_b, A), lambda i: (i, 0)))  # eps / action
        args.append(act_in)

    cost = pl.CostEstimate(
        flops=2 * b_pad * (OBS * H + H * H + H * A),
        transcendentals=2 * b_pad * H,
        bytes_accessed=4 * (b_pad * OBS + OBS * H + H * H + H * A + 4 * P
                            + (0 if mode == "det" else b_pad * A) + b_pad * out_w),
    )

    slab = pl.pallas_call(
        kernel,
        out_shape=jax.ShapeDtypeStruct((b_pad, out_w), jnp.float32),
        grid=grid,
        in_specs=in_specs,
        out_specs=pl.BlockSpec((tile_b, out_w), lambda i: (i, 0)),
        compiler_params=pltpu.CompilerParams(
            dimension_semantics=("parallel",)),               # megacore shard over B
        cost_estimate=cost,
    )(*args)

    # ---- state-independent pieces (depend only on log_std) stay in plain XLA ----
    logp_const = jnp.sum(-log_std - _HALF_LOG_2PI)                          # scalar
    entropy_row = jnp.sum(0.5 + _HALF_LOG_2PI + log_std, axis=-1,
                          keepdims=True)                                    # [1, 1]
    # NOTE: downstream consumers that don't need materialized [B,*] constants can
    # read log_std / entropy_row directly; we keep reference shapes here.
    entropy = jnp.broadcast_to(entropy_row, (B, 1))
    scale = jnp.broadcast_to(scale_1a, (B, A))

    if mode == "det":
        loc = slab[:B, :A]
        action_out = loc                                      # mode of the Normal
        logp = jnp.broadcast_to(jnp.reshape(logp_const, (1, 1)), (B, 1))
    else:
        action_out = slab[:B, :A]
        loc = slab[:B, A:2 * A]
        logp = slab[:B, 2 * A:2 * A + 1] + logp_const

    return action_out, logp, entropy, loc, scale


def init_params(key, obs_dim, hidden, act_dim):
    ks = jax.random.split(key, 4)

    def lin(k, fan_in, fan_out):
        lim = 1.0 / math.sqrt(fan_in)
        return jax.random.uniform(k, (fan_in, fan_out), jnp.float32, -lim, lim)

    return {
        "w1": lin(ks[0], obs_dim, hidden),
        "b1": jnp.zeros((1, hidden), jnp.float32),
        "w2": lin(ks[1], hidden, hidden),
        "b2": jnp.zeros((1, hidden), jnp.float32),
        "w_mu": lin(ks[2], hidden, act_dim),
        "b_mu": jnp.zeros((1, act_dim), jnp.float32),
        "log_std": jnp.full((1, act_dim), -0.5, jnp.float32),
    }


def _reference_forward(params, obs, act_in, use_given):
    """Pure-JAX reference for correctness checking."""
    h1 = jnp.tanh(obs @ params["w1"] + params["b1"])
    h2 = jnp.tanh(h1 @ params["w2"] + params["b2"])
    loc = h2 @ params["w_mu"] + params["b_mu"]
    scale = jnp.exp(params["log_std"])
    action = act_in if use_given else loc + scale * act_in
    z = (action - loc) / scale
    logp = jnp.sum(-0.5 * z * z - params["log_std"] - _HALF_LOG_2PI,
                   axis=-1, keepdims=True)
    ent = jnp.broadcast_to(
        jnp.sum(0.5 + _HALF_LOG_2PI + params["log_std"], axis=-1, keepdims=True),
        (obs.shape[0], 1))
    return action, logp, ent, loc, jnp.broadcast_to(scale, loc.shape)


if __name__ == "__main__":
    B, OBS, H, A = 8, 32, 64, 8
    key = jax.random.PRNGKey(0)
    (k_obs, k_eps, k_act, k_par, k_obs2, k_eps2,
     k_obs3, k_act3) = jax.random.split(key, 8)

    params = init_params(k_par, OBS, H, A)
    obs = jax.random.normal(k_obs, (B, OBS), jnp.float32)
    eps = jax.random.normal(k_eps, (B, A), jnp.float32)
    given_action = jax.random.normal(k_act, (B, A), jnp.float32)

    # rollout (stochastic sample)
    out_sample = actor_forward(params, obs, eps=eps)
    jax.block_until_ready(out_sample)
    ref_sample = _reference_forward(params, obs, eps, use_given=False)

    # deterministic (mode)
    out_det = actor_forward(params, obs, deterministic=True)
    jax.block_until_ready(out_det)
    ref_det = _reference_forward(params, obs, jnp.zeros((B, A), jnp.float32),
                                 use_given=False)

    # eval_action path
    out_eval = actor_forward(params, obs, action=given_action, eval_action=True)
    jax.block_until_ready(out_eval)
    ref_eval = _reference_forward(params, obs, given_action, use_given=True)

    # larger batch -> exercises the multi-step "parallel" B grid
    B2 = 512
    obs2 = jax.random.normal(k_obs2, (B2, OBS), jnp.float32)
    eps2 = jax.random.normal(k_eps2, (B2, A), jnp.float32)
    out_big = actor_forward(params, obs2, eps=eps2)
    jax.block_until_ready(out_big)
    ref_big = _reference_forward(params, obs2, eps2, use_given=False)

    # non-divisible batch -> exercises batch padding + >=2 grid steps
    B3 = 300
    obs3 = jax.random.normal(k_obs3, (B3, OBS), jnp.float32)
    act3 = jax.random.normal(k_act3, (B3, A), jnp.float32)
    out_odd = actor_forward(params, obs3, action=act3, eval_action=True)
    jax.block_until_ready(out_odd)
    ref_odd = _reference_forward(params, obs3, act3, use_given=True)

    for got, ref in zip(out_sample, ref_sample):
        assert jnp.allclose(got, ref, atol=1e-4, rtol=1e-4)
    for got, ref in zip(out_det, ref_det):
        assert jnp.allclose(got, ref, atol=1e-4, rtol=1e-4)
    for got, ref in zip(out_eval, ref_eval):
        assert jnp.allclose(got, ref, atol=1e-4, rtol=1e-4)
    for got, ref in zip(out_big, ref_big):
        assert jnp.allclose(got, ref, atol=1e-4, rtol=1e-4)
    for got, ref in zip(out_odd, ref_odd):
        assert jnp.allclose(got, ref, atol=1e-4, rtol=1e-4)
    # deterministic action must equal loc (mode of a Normal)
    assert jnp.allclose(out_det[0], out_det[3], atol=1e-6)

    print("KERNEL_OK")
</pallas_src>

<mosaic_0001>
module attributes {stable_mosaic.version = 11 : i64} {
  func.func @_actor_kernel(%arg0: i32, %arg1: memref<8x32xf32, #tpu.memory_space<vmem>>, %arg2: memref<32x64xf32, #tpu.memory_space<vmem>>, %arg3: memref<64x64xf32, #tpu.memory_space<vmem>>, %arg4: memref<64x8xf32, #tpu.memory_space<vmem>>, %arg5: memref<4x128xf32, #tpu.memory_space<vmem>>, %arg6: memref<8x8xf32, #tpu.memory_space<vmem>>, %arg7: memref<8x17xf32, #tpu.memory_space<vmem>>) attributes {dimension_semantics = [#tpu.dimension_semantics<parallel>], iteration_bounds = array<i64: 1>, scalar_prefetch = 0 : i64, scratch_operands = 0 : i64, tpu.core_type = #tpu.core_type<tc>, window_params = [{transform_indices = @transform_0, window_bounds = array<i64: 8, 32>}, {pipeline_mode = #tpu.pipeline_mode<synchronous>, transform_indices = @transform_1, window_bounds = array<i64: 32, 64>}, {pipeline_mode = #tpu.pipeline_mode<synchronous>, transform_indices = @transform_2, window_bounds = array<i64: 64, 64>}, {pipeline_mode = #tpu.pipeline_mode<synchronous>, transform_indices = @transform_3, window_bounds = array<i64: 64, 8>}, {pipeline_mode = #tpu.pipeline_mode<synchronous>, transform_indices = @transform_4, window_bounds = array<i64: 4, 128>}, {transform_indices = @transform_5, window_bounds = array<i64: 8, 8>}, {transform_indices = @transform_6, window_bounds = array<i64: 8, 17>}]} {
    %c0 = arith.constant 0 : index
    %c0_0 = arith.constant 0 : index
    %0 = vector.load %arg5[%c0, %c0_0] : memref<4x128xf32, #tpu.memory_space<vmem>>, vector<1x64xf32>
    %c1 = arith.constant 1 : index
    %c0_1 = arith.constant 0 : index
    %1 = vector.load %arg5[%c1, %c0_1] : memref<4x128xf32, #tpu.memory_space<vmem>>, vector<1x64xf32>
    %c2 = arith.constant 2 : index
    %c0_2 = arith.constant 0 : index
    %2 = vector.load %arg5[%c2, %c0_2] : memref<4x128xf32, #tpu.memory_space<vmem>>, vector<1x8xf32>
    %c0_3 = arith.constant 0 : index
    %c0_4 = arith.constant 0 : index
    %3 = vector.load %arg1[%c0_3, %c0_4] : memref<8x32xf32, #tpu.memory_space<vmem>>, vector<8x32xf32>
    %c0_5 = arith.constant 0 : index
    %c0_6 = arith.constant 0 : index
    %4 = vector.load %arg2[%c0_5, %c0_6] : memref<32x64xf32, #tpu.memory_space<vmem>>, vector<32x64xf32>
    %cst = arith.constant dense<0.000000e+00> : vector<8x64xf32>
    %5 = tpu.matmul %3, %4, %cst {dimension_numbers = #tpu.dot_dimension_numbers<[1], [0], [0], [1], [0, 0, 1, 1], [], []>} : vector<8x32xf32>, vector<32x64xf32>, vector<8x64xf32> -> vector<8x64xf32>
    %6 = vector.broadcast %0 : vector<1x64xf32> to vector<8x64xf32>
    %7 = arith.addf %5, %6 : vector<8x64xf32>
    %8 = math.tanh %7 : vector<8x64xf32>
    %c0_7 = arith.constant 0 : index
    %c0_8 = arith.constant 0 : index
    %9 = vector.load %arg3[%c0_7, %c0_8] : memref<64x64xf32, #tpu.memory_space<vmem>>, vector<64x64xf32>
    %cst_9 = arith.constant dense<0.000000e+00> : vector<8x64xf32>
    %10 = tpu.matmul %8, %9, %cst_9 {dimension_numbers = #tpu.dot_dimension_numbers<[1], [0], [0], [1], [0, 0, 1, 1], [], []>} : vector<8x64xf32>, vector<64x64xf32>, vector<8x64xf32> -> vector<8x64xf32>
    %11 = vector.broadcast %1 : vector<1x64xf32> to vector<8x64xf32>
    %12 = arith.addf %10, %11 : vector<8x64xf32>
    %13 = math.tanh %12 : vector<8x64xf32>
    %c0_10 = arith.constant 0 : index
    %c0_11 = arith.constant 0 : index
    %14 = vector.load %arg4[%c0_10, %c0_11] : memref<64x8xf32, #tpu.memory_space<vmem>>, vector<64x8xf32>
    %cst_12 = arith.constant dense<0.000000e+00> : vector<8x8xf32>
    %15 = tpu.matmul %13, %14, %cst_12 {dimension_numbers = #tpu.dot_dimension_numbers<[1], [0], [0], [1], [0, 0, 1, 1], [], []>} : vector<8x64xf32>, vector<64x8xf32>, vector<8x8xf32> -> vector<8x8xf32>
    %16 = vector.broadcast %2 : vector<1x8xf32> to vector<8x8xf32>
    %17 = arith.addf %15, %16 : vector<8x8xf32>
    %c0_13 = arith.constant 0 : index
    %c0_14 = arith.constant 0 : index
    %18 = vector.load %arg6[%c0_13, %c0_14] : memref<8x8xf32, #tpu.memory_space<vmem>>, vector<8x8xf32>
    %c3 = arith.constant 3 : index
    %c0_15 = arith.constant 0 : index
    %19 = vector.load %arg5[%c3, %c0_15] : memref<4x128xf32, #tpu.memory_space<vmem>>, vector<1x8xf32>
    %20 = vector.broadcast %19 : vector<1x8xf32> to vector<8x8xf32>
    %21 = arith.mulf %20, %18 : vector<8x8xf32>
    %22 = arith.addf %17, %21 : vector<8x8xf32>
    %23 = arith.mulf %18, %18 : vector<8x8xf32>
    %cst_16 = arith.constant dense<0.000000e+00> : vector<8xf32>
    %24 = vector.multi_reduction <add>, %23, %cst_16 [1] : vector<8x8xf32> to vector<8xf32>
    %25 = vector.shape_cast %24 : vector<8xf32> to vector<8x1xf32>
    %cst_17 = arith.constant -5.000000e-01 : f32
    %26 = vector.broadcast %cst_17 : f32 to vector<8x1xf32>
    %27 = arith.mulf %26, %25 : vector<8x1xf32>
    %28 = tpu.concatenate %22, %17, %27 in 1 : vector<8x8xf32>, vector<8x8xf32>, vector<8x1xf32> -> vector<8x17xf32>
    %c0_18 = arith.constant 0 : index
    %c0_19 = arith.constant 0 : index
    %29 = vector.load %arg7[%c0_18, %c0_19] : memref<8x17xf32, #tpu.memory_space<vmem>>, vector<8x17xf32>
    tpu.vector_store %arg7[%c0_18, %c0_19], %28 {strides = array<i32>} : memref<8x17xf32, #tpu.memory_space<vmem>>, vector<8x17xf32>,
    return
  }
  func.func @transform_0(%arg0: i32) -> (i32, i32) {
    %c0_i32 = arith.constant 0 : i32
    %c0_i32_0 = arith.constant 0 : i32
    return %arg0, %c0_i32 : i32, i32
  }
  func.func @transform_1(%arg0: i32) -> (i32, i32) {
    %c0_i32 = arith.constant 0 : i32
    %c0_i32_0 = arith.constant 0 : i32
    %c0_i32_1 = arith.constant 0 : i32
    return %c0_i32, %c0_i32_0 : i32, i32
  }
  func.func @transform_2(%arg0: i32) -> (i32, i32) {
    %c0_i32 = arith.constant 0 : i32
    %c0_i32_0 = arith.constant 0 : i32
    %c0_i32_1 = arith.constant 0 : i32
    return %c0_i32, %c0_i32_0 : i32, i32
  }
  func.func @transform_3(%arg0: i32) -> (i32, i32) {
    %c0_i32 = arith.constant 0 : i32
    %c0_i32_0 = arith.constant 0 : i32
    %c0_i32_1 = arith.constant 0 : i32
    return %c0_i32, %c0_i32_0 : i32, i32
  }
  func.func @transform_4(%arg0: i32) -> (i32, i32) {
    %c0_i32 = arith.constant 0 : i32
    %c0_i32_0 = arith.constant 0 : i32
    %c0_i32_1 = arith.constant 0 : i32
    return %c0_i32, %c0_i32_0 : i32, i32
  }
  func.func @transform_5(%arg0: i32) -> (i32, i32) {
    %c0_i32 = arith.constant 0 : i32
    %c0_i32_0 = arith.constant 0 : i32
    return %arg0, %c0_i32 : i32, i32
  }
  func.func @transform_6(%arg0: i32) -> (i32, i32) {
    %c0_i32 = arith.constant 0 : i32
    %c0_i32_0 = arith.constant 0 : i32
    return %arg0, %c0_i32 : i32, i32
  }
}

</mosaic_0001>

<llo_original>
// kernel: tpu_custom_call.1
$region0: #{tpu_custom_call.1}
  #allocation0 [shape = 'u32[]', space=smem, size = 0x4, offset = 0x4, fixed_abs, tag = 'smem constant byte address 0x4 - core index']
  #allocation1 [shape = 'u32[144,128]{1,0:T(1,128)}', space=vmem, size = 0x12000, scoped, tag = 'internal scratch']
  %s0 = inlined_call_operand.vmem [shape: f32[8,32], index: 0, kind: input, shape index: {}]
  %s1 = inlined_call_operand.hbm [shape: f32[32,64], index: 1, kind: input, shape index: {}]
  %s2 = inlined_call_operand.vmem [shape: f32[64,64], index: 2, kind: input, shape index: {}]
  %s3 = inlined_call_operand.vmem [shape: f32[64,8], index: 3, kind: input, shape index: {}]
  %s4 = inlined_call_operand.hbm [shape: f32[4,128], index: 4, kind: input, shape index: {}]
  %s5 = inlined_call_operand.vmem [shape: f32[8,8], index: 5, kind: input, shape index: {}]
  %s6 = inlined_call_operand.hbm [shape: f32[8,17], index: 6, kind: output, shape index: {}]
  %s7 = sld [smem:[#allocation0]]
  $region42: #{tpu_custom_call.1} parent=0
    _
  %s9 = ssub.s32 1, %s7
  %s10 = scalar_select 0, %s9, %s7
  $region1: #{tpu_custom_call.1} parent=0
    #allocation2 [shape = 'u8[16384]{0}', space=vmem, size = 0x4000, scoped, tag = 'input window, operand 1, single buffered']
    #allocation3 [shape = 's32[1]{0}', space=sflag, size = 0x4, scoped, tag = 'scoped memory for tpu_custom_call.1']
    #allocation4 [shape = 's32[1]{0}', space=sflag, size = 0x4, scoped, tag = 'scoped memory for tpu_custom_call.1']
    #allocation5 [shape = 'u8[2048]{0}', space=vmem, size = 0x800, scoped, tag = 'input window, operand 4, single buffered']
    #allocation6 [shape = 's32[1]{0}', space=sflag, size = 0x4, scoped, tag = 'scoped memory for tpu_custom_call.1']
    #allocation7 [shape = 'u8[4096]{0}', space=vmem, size = 0x1000, scoped, tag = 'output window, operand 0, single buffered']
    %11 = vsyncpa [#allocation3], 0
    %12 = vsyncpa [#allocation6], 0
    %13 = vsyncpa [#allocation4], 0
    // Predicated region
    $region2: #{tpu_custom_call.1} parent=1 // pred_check
      _
    $region3: #{tpu_custom_call.1} parent=1 // pred_check_branch
      %15 = sbr.rel (0) target = $region5
    $region4: #{tpu_custom_call.1} parent=1 // pred_region
      _
    $region5: #{tpu_custom_call.1} parent=1 // pred_fallthru
      _
    // Predicated region
    $region6: #{tpu_custom_call.1} parent=1 // pred_check
      _
    $region7: #{tpu_custom_call.1} parent=1 // pred_check_branch
      %17 = sbr.rel (0) target = $region9
    $region8: #{tpu_custom_call.1} parent=1 // pred_region
      %s19 = ssub.s32 512, 512
      %20 = vsyncadd [#allocation3], %s19
      %s21 = sshll.u32 [#allocation2], 4
      %s22 = int_to_ptr.vmem [resolvable:$true] %s21
      %27 = dma.hbm_to_vmem [thread:$0]  %s1, 512, %s22, [#allocation3], 128, 128, 8
    $region9: #{tpu_custom_call.1} parent=1 // pred_fallthru
      _
    // Predicated region
    $region10: #{tpu_custom_call.1} parent=1 // pred_check
      _
    $region11: #{tpu_custom_call.1} parent=1 // pred_check_branch
      %29 = sbr.rel (0) target = $region13
    $region12: #{tpu_custom_call.1} parent=1 // pred_region
      _
    $region13: #{tpu_custom_call.1} parent=1 // pred_fallthru
      _
    // Predicated region
    $region14: #{tpu_custom_call.1} parent=1 // pred_check
      _
    $region15: #{tpu_custom_call.1} parent=1 // pred_check_branch
      %31 = sbr.rel (0) target = $region17
    $region16: #{tpu_custom_call.1} parent=1 // pred_region
      _
    $region17: #{tpu_custom_call.1} parent=1 // pred_fallthru
      _
    // Predicated region
    $region18: #{tpu_custom_call.1} parent=1 // pred_check
      _
    $region19: #{tpu_custom_call.1} parent=1 // pred_check_branch
      %33 = sbr.rel (0) target = $region21
    $region20: #{tpu_custom_call.1} parent=1 // pred_region
      %s35 = ssub.s32 64, 64
      %36 = vsyncadd [#allocation6], %s35
      %s38 = sshll.u32 [#allocation5], 4
      %s39 = int_to_ptr.vmem [resolvable:$true] %s38
      %41 = dma.hbm_to_vmem [thread:$0]  %s4, 64, %s39, [#allocation6]
    $region21: #{tpu_custom_call.1} parent=1 // pred_fallthru
      _
    // Predicated region
    $region22: #{tpu_custom_call.1} parent=1 // pred_check
      _
    $region23: #{tpu_custom_call.1} parent=1 // pred_check_branch
      %43 = sbr.rel (0) target = $region25
    $region24: #{tpu_custom_call.1} parent=1 // pred_region
      _
    $region25: #{tpu_custom_call.1} parent=1 // pred_fallthru
      _
    // Predicated region
    $region26: #{tpu_custom_call.1} parent=1 // pred_check
      _
    $region27: #{tpu_custom_call.1} parent=1 // pred_check_branch
      %45 = sbr.rel (0) target = $region29
    $region28: #{tpu_custom_call.1} parent=1 // pred_region
      %46 = dma.done [#allocation3], 512
    $region29: #{tpu_custom_call.1} parent=1 // pred_fallthru
      _
    // Predicated region
    $region30: #{tpu_custom_call.1} parent=1 // pred_check
      _
    $region31: #{tpu_custom_call.1} parent=1 // pred_check_branch
      %48 = sbr.rel (0) target = $region33
    $region32: #{tpu_custom_call.1} parent=1 // pred_region
      %49 = dma.done [#allocation6], 64
    $region33: #{tpu_custom_call.1} parent=1 // pred_fallthru
      _
    %v50 = vld [vmem:[#allocation5] sm:$0x1]
    %v51 = vld [vmem:[#allocation5 + $0x1] sm:$0x1]
    %v52 = vld [vmem:[#allocation5 + $0x2] sm:$0x1]
    %v53 = vld [vmem:[%s0] sm:$0xff]
    %v54 = vld [vmem:[#allocation2] sm:$0xff]
    %v55 = vld [vmem:[#allocation2 + $0x8] sm:$0xff]
    %v56 = vld [vmem:[#allocation2 + $0x10] sm:$0xff]
    %v57 = vld [vmem:[#allocation2 + $0x18] sm:$0xff]
    %v58 = vlaneseq
    %v59 = vshrl.u32 %v58, 7
    %v60 = vsub.s32 0, %v59
    %v61 = vrot.slane %v50, %v60
    %vm62 = vcmask 261120
    %v64 = vsel %vm62, %v53, 0
    %66 = vmatprep.subr.mxu0 0.0
    %67 = vmatpush1.msra.mxu0 %v54
    %68 = vmatprep.subr.mxu0 0.0
    %69 = vmatpush1.msra.mxu0 %v55
    %70 = vmatprep.subr.mxu0 0.0
    %71 = vmatpush1.msra.mxu0 %v56
    %72 = vmatprep.subr.mxu0 0.0
    %73 = vmatpush1.msra.mxu0 %v57
    %74 = vmatprep.subr.mxu0 0.0
    %75 = vmatpush1.msra.mxu0 0.0
    %76 = vmatprep.subr.mxu0 0.0
    %77 = vmatpush1.msra.mxu0 0.0
    %78 = vmatprep.subr.mxu0 0.0
    %79 = vmatpush1.msra.mxu0 0.0
    %80 = vmatprep.subr.mxu0 0.0
    %81 = vmatpush1.msra.mxu0 0.0
    %82 = vmatprep.subr.mxu0 0.0
    %83 = vmatpush1.msra.mxu0 0.0
    %84 = vmatprep.subr.mxu0 0.0
    %85 = vmatpush1.msra.mxu0 0.0
    %86 = vmatprep.subr.mxu0 0.0
    %87 = vmatpush1.msra.mxu0 0.0
    %88 = vmatprep.subr.mxu0 0.0
    %89 = vmatpush1.msra.mxu0 0.0
    %90 = vmatprep.subr.mxu0 0.0
    %91 = vmatpush1.msra.mxu0 0.0
    %92 = vmatprep.subr.mxu0 0.0
    %93 = vmatpush1.msra.mxu0 0.0
    %94 = vmatprep.subr.mxu0 0.0
    %95 = vmatpush1.msra.mxu0 0.0
    %96 = vmatprep.subr.mxu0 0.0
    %97 = vmatpush1.msra.mxu0 0.0
    %98 = vmatprep.subr.mxu0 0.0
    %99 = vmatpush1.msra.mxu0 0.0
    %100 = vmatprep.subr.mxu0 0.0
    %101 = vmatpush1.msra.mxu0 0.0
    %102 = vmatprep.subr.mxu0 0.0
    %103 = vmatpush1.msra.mxu0 0.0
    %104 = vmatprep.subr.mxu0 0.0
    %105 = vmatpush1.msra.mxu0 0.0
    %106 = vmatprep.subr.mxu0 0.0
    %107 = vmatpush1.msra.mxu0 0.0
    %108 = vmatprep.subr.mxu0 0.0
    %109 = vmatpush1.msra.mxu0 0.0
    %110 = vmatprep.subr.mxu0 0.0
    %111 = vmatpush1.msra.mxu0 0.0
    %112 = vmatprep.subr.mxu0 0.0
    %113 = vmatpush1.msra.mxu0 0.0
    %114 = vmatprep.subr.mxu0 0.0
    %115 = vmatpush1.msra.mxu0 0.0
    %116 = vmatprep.subr.mxu0 0.0
    %117 = vmatpush1.msra.mxu0 0.0
    %118 = vmatprep.subr.mxu0 0.0
    %119 = vmatpush1.msra.mxu0 0.0
    %120 = vmatprep.subr.mxu0 0.0
    %121 = vmatpush1.msra.mxu0 0.0
    %122 = vmatprep.subr.mxu0 0.0
    %123 = vmatpush1.msra.mxu0 0.0
    %124 = vmatprep.subr.mxu0 0.0
    %125 = vmatpush1.msra.mxu0 0.0
    %126 = vmatprep.subr.mxu0 0.0
    %127 = vmatpush1.msra.mxu0 0.0
    %128 = vmatprep.subr.mxu0 0.0
    %129 = vmatpush1.msra.mxu0 0.0
    %130 = vmatprep.mubr.f32.mxu0 0.0
    %131 = vmatmul.mubr.f32.gmra.mrb[0].mxu0 %v64
    %v132 = vpop.f32.mrb[0].mxu0
    %v133 = vadd.f32 %v61, %v132
    %v134 = vpop.f32.mrb[0].mxu0
    %135 = vdwg.mxu0
    %v136 = vtanh.pop %v133
    %v137 = vld [vmem:[%s2] sm:$0xff]
    %v138 = vld [vmem:[%s2 + $0x8] sm:$0xff]
    %v139 = vld [vmem:[%s2 + $0x10] sm:$0xff]
    %v140 = vld [vmem:[%s2 + $0x18] sm:$0xff]
    %v141 = vld [vmem:[%s2 + $0x20] sm:$0xff]
    %v142 = vld [vmem:[%s2 + $0x28] sm:$0xff]
    %v143 = vld [vmem:[%s2 + $0x30] sm:$0xff]
    %v144 = vld [vmem:[%s2 + $0x38] sm:$0xff]
    %v145 = vlaneseq
    %v146 = vshrl.u32 %v145, 7
    %v147 = vsub.s32 0, %v146
    %v148 = vrot.slane %v51, %v147
    %vm149 = vcmask 523264
    %v151 = vsel %vm149, %v136, 0
    %153 = vmatprep.subr.mxu0 0.0
    %154 = vmatpush1.msra.mxu0 %v137
    %155 = vmatprep.subr.mxu0 0.0
    %156 = vmatpush1.msra.mxu0 %v138
    %157 = vmatprep.subr.mxu0 0.0
    %158 = vmatpush1.msra.mxu0 %v139
    %159 = vmatprep.subr.mxu0 0.0
    %160 = vmatpush1.msra.mxu0 %v140
    %161 = vmatprep.subr.mxu0 0.0
    %162 = vmatpush1.msra.mxu0 %v141
    %163 = vmatprep.subr.mxu0 0.0
    %164 = vmatpush1.msra.mxu0 %v142
    %165 = vmatprep.subr.mxu0 0.0
    %166 = vmatpush1.msra.mxu0 %v143
    %167 = vmatprep.subr.mxu0 0.0
    %168 = vmatpush1.msra.mxu0 %v144
    %169 = vmatprep.subr.mxu0 0.0
    %170 = vmatpush1.msra.mxu0 0.0
    %171 = vmatprep.subr.mxu0 0.0
    %172 = vmatpush1.msra.mxu0 0.0
    %173 = vmatprep.subr.mxu0 0.0
    %174 = vmatpush1.msra.mxu0 0.0
    %175 = vmatprep.subr.mxu0 0.0
    %176 = vmatpush1.msra.mxu0 0.0
    %177 = vmatprep.subr.mxu0 0.0
    %178 = vmatpush1.msra.mxu0 0.0
    %179 = vmatprep.subr.mxu0 0.0
    %180 = vmatpush1.msra.mxu0 0.0
    %181 = vmatprep.subr.mxu0 0.0
    %182 = vmatpush1.msra.mxu0 0.0
    %183 = vmatprep.subr.mxu0 0.0
    %184 = vmatpush1.msra.mxu0 0.0
    %185 = vmatprep.subr.mxu0 0.0
    %186 = vmatpush1.msra.mxu0 0.0
    %187 = vmatprep.subr.mxu0 0.0
    %188 = vmatpush1.msra.mxu0 0.0
    %189 = vmatprep.subr.mxu0 0.0
    %190 = vmatpush1.msra.mxu0 0.0
    %191 = vmatprep.subr.mxu0 0.0
    %192 = vmatpush1.msra.mxu0 0.0
    %193 = vmatprep.subr.mxu0 0.0
    %194 = vmatpush1.msra.mxu0 0.0
    %195 = vmatprep.subr.mxu0 0.0
    %196 = vmatpush1.msra.mxu0 0.0
    %197 = vmatprep.subr.mxu0 0.0
    %198 = vmatpush1.msra.mxu0 0.0
    %199 = vmatprep.subr.mxu0 0.0
    %200 = vmatpush1.msra.mxu0 0.0
    %201 = vmatprep.subr.mxu0 0.0
    %202 = vmatpush1.msra.mxu0 0.0
    %203 = vmatprep.subr.mxu0 0.0
    %204 = vmatpush1.msra.mxu0 0.0
    %205 = vmatprep.subr.mxu0 0.0
    %206 = vmatpush1.msra.mxu0 0.0
    %207 = vmatprep.subr.mxu0 0.0
    %208 = vmatpush1.msra.mxu0 0.0
    %209 = vmatprep.subr.mxu0 0.0
    %210 = vmatpush1.msra.mxu0 0.0
    %211 = vmatprep.subr.mxu0 0.0
    %212 = vmatpush1.msra.mxu0 0.0
    %213 = vmatprep.subr.mxu0 0.0
    %214 = vmatpush1.msra.mxu0 0.0
    %215 = vmatprep.subr.mxu0 0.0
    %216 = vmatpush1.msra.mxu0 0.0
    %217 = vmatprep.mubr.f32.mxu0 0.0
    %218 = vmatmul.mubr.f32.gmra.mrb[0].mxu0 %v151
    %v219 = vpop.f32.mrb[0].mxu0
    %v220 = vadd.f32 %v148, %v219
    %v221 = vpop.f32.mrb[0].mxu0
    %222 = vdwg.mxu0
    %v223 = vtanh.pop %v220
    %v224 = vld [vmem:[%s3] sm:$0xff]
    %v225 = vld [vmem:[%s3 + $0x8] sm:$0xff]
    %v226 = vld [vmem:[%s3 + $0x10] sm:$0xff]
    %v227 = vld [vmem:[%s3 + $0x18] sm:$0xff]
    %v228 = vld [vmem:[%s3 + $0x20] sm:$0xff]
    %v229 = vld [vmem:[%s3 + $0x28] sm:$0xff]
    %v230 = vld [vmem:[%s3 + $0x30] sm:$0xff]
    %v231 = vld [vmem:[%s3 + $0x38] sm:$0xff]
    %v232 = vlaneseq
    %v233 = vshrl.u32 %v232, 7
    %v234 = vsub.s32 0, %v233
    %v235 = vrot.slane %v52, %v234
    %v237 = vsel %vm149, %v223, 0
    %239 = vmatprep.subr.mxu0 0.0
    %240 = vmatpush1.msra.mxu0 %v224
    %241 = vmatprep.subr.mxu0 0.0
    %242 = vmatpush1.msra.mxu0 %v225
    %243 = vmatprep.subr.mxu0 0.0
    %244 = vmatpush1.msra.mxu0 %v226
    %245 = vmatprep.subr.mxu0 0.0
    %246 = vmatpush1.msra.mxu0 %v227
    %247 = vmatprep.subr.mxu0 0.0
    %248 = vmatpush1.msra.mxu0 %v228
    %249 = vmatprep.subr.mxu0 0.0
    %250 = vmatpush1.msra.mxu0 %v229
    %251 = vmatprep.subr.mxu0 0.0
    %252 = vmatpush1.msra.mxu0 %v230
    %253 = vmatprep.subr.mxu0 0.0
    %254 = vmatpush1.msra.mxu0 %v231
    %255 = vmatprep.subr.mxu0 0.0
    %256 = vmatpush1.msra.mxu0 0.0
    %257 = vmatprep.subr.mxu0 0.0
    %258 = vmatpush1.msra.mxu0 0.0
    %259 = vmatprep.subr.mxu0 0.0
    %260 = vmatpush1.msra.mxu0 0.0
    %261 = vmatprep.subr.mxu0 0.0
    %262 = vmatpush1.msra.mxu0 0.0
    %263 = vmatprep.subr.mxu0 0.0
    %264 = vmatpush1.msra.mxu0 0.0
    %265 = vmatprep.subr.mxu0 0.0
    %266 = vmatpush1.msra.mxu0 0.0
    %267 = vmatprep.subr.mxu0 0.0
    %268 = vmatpush1.msra.mxu0 0.0
    %269 = vmatprep.subr.mxu0 0.0
    %270 = vmatpush1.msra.mxu0 0.0
    %271 = vmatprep.subr.mxu0 0.0
    %272 = vmatpush1.msra.mxu0 0.0
    %273 = vmatprep.subr.mxu0 0.0
    %274 = vmatpush1.msra.mxu0 0.0
    %275 = vmatprep.subr.mxu0 0.0
    %276 = vmatpush1.msra.mxu0 0.0
    %277 = vmatprep.subr.mxu0 0.0
    %278 = vmatpush1.msra.mxu0 0.0
    %279 = vmatprep.subr.mxu0 0.0
    %280 = vmatpush1.msra.mxu0 0.0
    %281 = vmatprep.subr.mxu0 0.0
    %282 = vmatpush1.msra.mxu0 0.0
    %283 = vmatprep.subr.mxu0 0.0
    %284 = vmatpush1.msra.mxu0 0.0
    %285 = vmatprep.subr.mxu0 0.0
    %286 = vmatpush1.msra.mxu0 0.0
    %287 = vmatprep.subr.mxu0 0.0
    %288 = vmatpush1.msra.mxu0 0.0
    %289 = vmatprep.subr.mxu0 0.0
    %290 = vmatpush1.msra.mxu0 0.0
    %291 = vmatprep.subr.mxu0 0.0
    %292 = vmatpush1.msra.mxu0 0.0
    %293 = vmatprep.subr.mxu0 0.0
    %294 = vmatpush1.msra.mxu0 0.0
    %295 = vmatprep.subr.mxu0 0.0
    %296 = vmatpush1.msra.mxu0 0.0
    %297 = vmatprep.subr.mxu0 0.0
    %298 = vmatpush1.msra.mxu0 0.0
    %299 = vmatprep.subr.mxu0 0.0
    %300 = vmatpush1.msra.mxu0 0.0
    %301 = vmatprep.subr.mxu0 0.0
    %302 = vmatpush1.msra.mxu0 0.0
    %303 = vmatprep.mubr.f32.mxu0 0.0
    %304 = vmatmul.mubr.f32.gmra.mrb[0].mxu0 %v237
    %v305 = vpop.f32.mrb[0].mxu0
    %v306 = vadd.f32 %v235, %v305
    %v307 = vpop.f32.mrb[0].mxu0
    %308 = vdwg.mxu0
    %v309 = vld [vmem:[%s5] sm:$0xff]
    %v310 = vld [vmem:[#allocation5 + $0x3] sm:$0x1]
    %v311 = vlaneseq
    %v312 = vshrl.u32 %v311, 7
    %v313 = vsub.s32 0, %v312
    %v314 = vrot.slane %v310, %v313
    %v315 = vmul.f32 %v314, %v309
    %v316 = vadd.f32 %v306, %v315
    %v317 = vmul.f32 %v309, %v309
    %vm318 = vcmask 64512
    %v319 = vsel %vm318, %v317, 0.0
    %320 = vadd.xlane.f32.xlu0 %v319
    %v321 = vpop.xlane.xlu0 %320
    %v322 = vmul.f32 %v321, -0.5
    %324 = vrot.lane.b32.xlu0 %v306, 8
    %v325 = vpop.permute.xlu0 %324
    %v327 = vsel %vm318, %v316, %v325
    %vm328 = vcmask 130048
    %v329 = vsel %vm328, %v327, %v322
    %vm330 = vcmask 138240
    %331 = vst.msk [vmem:[#allocation7] sm:$0xff] %vm330, %v329
    // Predicated region
    $region34: #{tpu_custom_call.1} parent=1 // pred_check
      _
    $region35: #{tpu_custom_call.1} parent=1 // pred_check_branch
      %333 = sbr.rel (0) target = $region37
    $region36: #{tpu_custom_call.1} parent=1 // pred_region
      %s335 = ssub.s32 128, 128
      %336 = vsyncadd [#allocation4], %s335
      %s338 = sshll.u32 [#allocation7], 4
      %s339 = int_to_ptr.vmem [resolvable:$true] %s338
      %341 = dma.vmem_to_hbm [thread:$0]  %s339, 128, %s6, [#allocation4]
    $region37: #{tpu_custom_call.1} parent=1 // pred_fallthru
      _
    // Predicated region
    $region38: #{tpu_custom_call.1} parent=1 // pred_check
      _
    $region39: #{tpu_custom_call.1} parent=1 // pred_check_branch
      %343 = sbr.rel (0) target = $region41
    $region40: #{tpu_custom_call.1} parent=1 // pred_region
      %344 = dma.done [#allocation4], 128
    $region41: #{tpu_custom_call.1} parent=1 // pred_fallthru
      _
    %345 = vsyncpa [#allocation3], 1
    %346 = vsyncpa [#allocation6], 1
    %347 = vsyncpa [#allocation4], 1

</llo_original>
